<compile_context>
chip_gen: v5e
topology: v5e:2x2
jax: 0.10.0
libtpu: 0.0.40
codegen_flags: <defaults>
</compile_context>

<pallas_src>
import functools
import math

import jax
import jax.numpy as jnp
from jax.experimental import pallas as pl
from jax.experimental.pallas import tpu as pltpu

LANE = 128
SUBLANES = 8              # f32 vreg sublane count
MAX_BLOCK_ROWS = 2048     # 2048*128*4B = 1 MiB f32 per input tile per buffer
MAX_CHAINS = 8            # independent accumulation chains (VALU parallelism)
NUM_CORES = 2             # leading "parallel" grid axis (engages both TCs on v7x)


def _round_up(x, m):
    return ((x + m - 1) // m) * m


def _rfloss_kernel(act_ref, rew_ref, out_ref, acc_ref, *,
                   rows_total, block_rows, steps_per_core, nchains, emit_mask):
    c = pl.program_id(0)          # core-parallel axis
    i = pl.program_id(1)          # sequential reduction axis

    @pl.when(i == 0)
    def _init():
        acc_ref[...] = jnp.zeros_like(acc_ref)

    # Hot path: load tile, upcast in-register, log (EUP) * reward (VPU).
    a = act_ref[...].astype(jnp.float32)
    r = rew_ref[...].astype(jnp.float32)
    cost = jnp.log(a) * r

    def _accum(x):
        # (block_rows,128) -> (groups, nchains, 8, 128): summing over the
        # leading axis gives `nchains` independent vadd chains (pure VPU,
        # no XLU), keeping the reduce latency under the per-step HBM time.
        acc_ref[...] += x.reshape(
            block_rows // (nchains * SUBLANES), nchains, SUBLANES, LANE
        ).sum(axis=0)

    # Logical (unclamped) block position of this step; must stay consistent
    # with the BlockSpec index_map below (which clamps overflow blocks).
    block_start = (c * steps_per_core + i) * block_rows

    if emit_mask:
        in_bounds = block_start + block_rows <= rows_total

        @pl.when(in_bounds)
        def _fast():                     # all non-boundary blocks: no masking
            _accum(cost)

        @pl.when(jnp.logical_not(in_bounds))
        def _boundary():                 # ragged / overflow block only
            row_ids = block_start + jax.lax.broadcasted_iota(
                jnp.int32, (block_rows, LANE), 0)
            # where() discards any NaN/Inf produced by log() of garbage rows.
            _accum(jnp.where(row_ids < rows_total, cost, 0.0))
    else:
        _accum(cost)

    @pl.when(i == pl.num_programs(1) - 1)
    def _finalize():
        # Collapse the chains; per-core partial (1,8,128) goes to HBM.
        out_ref[...] = acc_ref[...].sum(axis=0, keepdims=True)


def rfloss_pallas(act, reward, loss_weight: float = 1.0):
    assert act.shape == reward.shape, "act and reward must have the same shape"
    n = act.size

    act_f = act.reshape(-1)      # free reshape, keeps HBM dtype
    rew_f = reward.reshape(-1)

    rows_raw = pl.cdiv(n, LANE)
    block_rows = min(MAX_BLOCK_ROWS, _round_up(rows_raw, SUBLANES))
    rows = max(rows_raw, block_rows)          # array rows (>= block_rows)

    pad = rows * LANE - n
    if pad:
        # Rare ragged path: pad so padded elements contribute exactly 0
        # (log(1) * 0 = 0).  At most ~block_rows worth of extra elements.
        act_f = jnp.concatenate([act_f, jnp.ones((pad,), act_f.dtype)])
        rew_f = jnp.concatenate([rew_f, jnp.zeros((pad,), rew_f.dtype)])

    act2 = act_f.reshape(rows, LANE)
    rew2 = rew_f.reshape(rows, LANE)

    steps_total = pl.cdiv(rows, block_rows)
    steps_per_core = pl.cdiv(steps_total, NUM_CORES)
    nchains = math.gcd(block_rows // SUBLANES, MAX_CHAINS)

    # Does any grid step's block extend past the real data? (static)
    emit_mask = NUM_CORES * steps_per_core * block_rows > rows
    # Overflow steps (odd steps_total) re-read the last real block (clamped
    # index) and are fully zeroed by the in-kernel mask.
    need_clamp = NUM_CORES * steps_per_core > steps_total

    def _in_index(c, i):
        logical = c * steps_per_core + i
        if need_clamp:
            logical = jnp.minimum(logical, steps_total - 1)
        return (logical, 0)

    kernel = functools.partial(
        _rfloss_kernel,
        rows_total=rows,
        block_rows=block_rows,
        steps_per_core=steps_per_core,
        nchains=nchains,
        emit_mask=emit_mask,
    )

    # TODO(synk): on v7x, sweep pltpu.CORE_PARALLEL for the leading axis and
    # pipeline_mode=pl.Buffered(3) on the input specs if a trace shows exposed DMA.
    partials = pl.pallas_call(
        kernel,
        out_shape=jax.ShapeDtypeStruct((NUM_CORES, SUBLANES, LANE), jnp.float32),
        grid_spec=pltpu.PrefetchScalarGridSpec(
            num_scalar_prefetch=0,
            grid=(NUM_CORES, steps_per_core),
            in_specs=[
                pl.BlockSpec((block_rows, LANE), _in_index),
                pl.BlockSpec((block_rows, LANE), _in_index),
            ],
            out_specs=pl.BlockSpec((1, SUBLANES, LANE), lambda c, i: (c, 0, 0)),
            scratch_shapes=[pltpu.VMEM((nchains, SUBLANES, LANE), jnp.float32)],
        ),
        compiler_params=pltpu.CompilerParams(
            dimension_semantics=("parallel", "arbitrary"),
        ),
    )(act2, rew2)

    # Combine the per-core partials; mean / negate / loss_weight (tiny XLA op).
    total = jnp.sum(partials)
    return -jnp.float32(loss_weight) * total / jnp.float32(n)


if __name__ == "__main__":
    key = jax.random.PRNGKey(0)
    k_act, k_rew = jax.random.split(key)

    # NCHW inputs, consistent with the PyTorch module's usage in basicsr.
    B, C, H, W = 2, 4, 16, 16
    # act must be positive (it goes through log); mimic probabilities/activations.
    act = jax.random.uniform(k_act, (B, C, H, W), jnp.float32, minval=0.05, maxval=1.0)
    reward = jax.random.normal(k_rew, (B, C, H, W), jnp.float32)

    loss_weight = 1.0
    loss = rfloss_pallas(act, reward, loss_weight=loss_weight)
    loss = jax.block_until_ready(loss)

    # pure-JAX reference check
    ref = loss_weight * (-jnp.mean(jnp.log(act) * reward))
    assert jnp.allclose(loss, ref, rtol=1e-5, atol=1e-6), (loss, ref)

    print("KERNEL_OK")
</pallas_src>

<mosaic_0001>
module attributes {stable_mosaic.version = 11 : i64} {
  func.func @_rfloss_kernel(%arg0: i32, %arg1: i32, %arg2: memref<16x128xf32, #tpu.memory_space<vmem>>, %arg3: memref<16x128xf32, #tpu.memory_space<vmem>>, %arg4: memref<1x8x128xf32, #tpu.memory_space<vmem>>, %arg5: memref<2x8x128xf32, #tpu.memory_space<vmem>>) attributes {dimension_semantics = [#tpu.dimension_semantics<parallel>, #tpu.dimension_semantics<arbitrary>], iteration_bounds = array<i64: 2, 1>, scalar_prefetch = 0 : i64, scratch_operands = 1 : i64, tpu.core_type = #tpu.core_type<tc>, window_params = [{transform_indices = @transform_0, window_bounds = array<i64: 16, 128>}, {transform_indices = @transform_1, window_bounds = array<i64: 16, 128>}, {transform_indices = @transform_2, window_bounds = array<i64: 1, 8, 128>}]} {
    %c0_i32 = arith.constant 0 : i32
    %0 = arith.cmpi eq, %arg1, %c0_i32 : i32
    %1 = arith.extui %0 : i1 to i32
    %c0_i32_0 = arith.constant 0 : i32
    %2 = arith.cmpi ne, %1, %c0_i32_0 : i32
    scf.if %2 {
      %cst = arith.constant 0.000000e+00 : f32
      %20 = vector.broadcast %cst : f32 to vector<2x8x128xf32>
      %c0_10 = arith.constant 0 : index
      %c0_11 = arith.constant 0 : index
      %c0_12 = arith.constant 0 : index
      %21 = vector.load %arg5[%c0_10, %c0_11, %c0_12] : memref<2x8x128xf32, #tpu.memory_space<vmem>>, vector<2x8x128xf32>
      tpu.vector_store %arg5[%c0_10, %c0_11, %c0_12], %20 {strides = array<i32>} : memref<2x8x128xf32, #tpu.memory_space<vmem>>, vector<2x8x128xf32>,
    } else {
    }
    %c0 = arith.constant 0 : index
    %c0_1 = arith.constant 0 : index
    %3 = vector.load %arg2[%c0, %c0_1] : memref<16x128xf32, #tpu.memory_space<vmem>>, vector<16x128xf32>
    %c0_2 = arith.constant 0 : index
    %c0_3 = arith.constant 0 : index
    %4 = vector.load %arg3[%c0_2, %c0_3] : memref<16x128xf32, #tpu.memory_space<vmem>>, vector<16x128xf32>
    %5 = math.log %3 : vector<16x128xf32>
    %6 = arith.mulf %5, %4 : vector<16x128xf32>
    %c1_i32 = arith.constant 1 : i32
    %7 = arith.muli %arg0, %c1_i32 : i32
    %8 = arith.addi %7, %arg1 : i32
    %c16_i32 = arith.constant 16 : i32
    %9 = arith.muli %8, %c16_i32 : i32
    %c16_i32_4 = arith.constant 16 : i32
    %10 = arith.addi %9, %c16_i32_4 : i32
    %c16_i32_5 = arith.constant 16 : i32
    %11 = arith.cmpi sle, %10, %c16_i32_5 : i32
    %12 = arith.extui %11 : i1 to i32
    %c0_i32_6 = arith.constant 0 : i32
    %13 = arith.cmpi ne, %12, %c0_i32_6 : i32
    scf.if %13 {
      %c0_10 = arith.constant 0 : index
      %c0_11 = arith.constant 0 : index
      %c0_12 = arith.constant 0 : index
      %20 = vector.load %arg5[%c0_10, %c0_11, %c0_12] : memref<2x8x128xf32, #tpu.memory_space<vmem>>, vector<2x8x128xf32>
      %21 = vector.shape_cast %6 : vector<16x128xf32> to vector<1x2x8x128xf32>
      %cst = arith.constant dense<0.000000e+00> : vector<2x8x128xf32>
      %22 = vector.multi_reduction <add>, %21, %cst [0] : vector<1x2x8x128xf32> to vector<2x8x128xf32>
      %23 = arith.addf %20, %22 : vector<2x8x128xf32>
      %c0_13 = arith.constant 0 : index
      %c0_14 = arith.constant 0 : index
      %c0_15 = arith.constant 0 : index
      %24 = vector.load %arg5[%c0_13, %c0_14, %c0_15] : memref<2x8x128xf32, #tpu.memory_space<vmem>>, vector<2x8x128xf32>
      tpu.vector_store %arg5[%c0_13, %c0_14, %c0_15], %23 {strides = array<i32>} : memref<2x8x128xf32, #tpu.memory_space<vmem>>, vector<2x8x128xf32>,
    } else {
    }
    %true = arith.constant true
    %14 = arith.xori %11, %true : i1
    %15 = arith.extui %14 : i1 to i32
    %c0_i32_7 = arith.constant 0 : i32
    %16 = arith.cmpi ne, %15, %c0_i32_7 : i32
    scf.if %16 {
      %20 = tpu.iota {dimensions = array<i32: 0>} : vector<16x128xi32>
      %21 = vector.broadcast %9 : i32 to vector<16x128xi32>
      %22 = arith.addi %21, %20 : vector<16x128xi32>
      %c16_i32_10 = arith.constant 16 : i32
      %23 = vector.broadcast %c16_i32_10 : i32 to vector<16x128xi32>
      %24 = arith.cmpi slt, %22, %23 : vector<16x128xi32>
      %cst = arith.constant 0.000000e+00 : f32
      %25 = vector.broadcast %cst : f32 to vector<16x128xf32>
      %26 = arith.select %24, %6, %25 : vector<16x128xi1>, vector<16x128xf32>
      %c0_11 = arith.constant 0 : index
      %c0_12 = arith.constant 0 : index
      %c0_13 = arith.constant 0 : index
      %27 = vector.load %arg5[%c0_11, %c0_12, %c0_13] : memref<2x8x128xf32, #tpu.memory_space<vmem>>, vector<2x8x128xf32>
      %28 = vector.shape_cast %26 : vector<16x128xf32> to vector<1x2x8x128xf32>
      %cst_14 = arith.constant dense<0.000000e+00> : vector<2x8x128xf32>
      %29 = vector.multi_reduction <add>, %28, %cst_14 [0] : vector<1x2x8x128xf32> to vector<2x8x128xf32>
      %30 = arith.addf %27, %29 : vector<2x8x128xf32>
      %c0_15 = arith.constant 0 : index
      %c0_16 = arith.constant 0 : index
      %c0_17 = arith.constant 0 : index
      %31 = vector.load %arg5[%c0_15, %c0_16, %c0_17] : memref<2x8x128xf32, #tpu.memory_space<vmem>>, vector<2x8x128xf32>
      tpu.vector_store %arg5[%c0_15, %c0_16, %c0_17], %30 {strides = array<i32>} : memref<2x8x128xf32, #tpu.memory_space<vmem>>, vector<2x8x128xf32>,
    } else {
    }
    %c0_i32_8 = arith.constant 0 : i32
    %17 = arith.cmpi eq, %arg1, %c0_i32_8 : i32
    %18 = arith.extui %17 : i1 to i32
    %c0_i32_9 = arith.constant 0 : i32
    %19 = arith.cmpi ne, %18, %c0_i32_9 : i32
    scf.if %19 {
      %c0_10 = arith.constant 0 : index
      %c0_11 = arith.constant 0 : index
      %c0_12 = arith.constant 0 : index
      %20 = vector.load %arg5[%c0_10, %c0_11, %c0_12] : memref<2x8x128xf32, #tpu.memory_space<vmem>>, vector<2x8x128xf32>
      %cst = arith.constant dense<0.000000e+00> : vector<8x128xf32>
      %21 = vector.multi_reduction <add>, %20, %cst [0] : vector<2x8x128xf32> to vector<8x128xf32>
      %22 = vector.shape_cast %21 : vector<8x128xf32> to vector<1x8x128xf32>
      %c0_13 = arith.constant 0 : index
      %c0_14 = arith.constant 0 : index
      %c0_15 = arith.constant 0 : index
      %23 = vector.load %arg4[%c0_13, %c0_14, %c0_15] : memref<1x8x128xf32, #tpu.memory_space<vmem>>, vector<1x8x128xf32>
      tpu.vector_store %arg4[%c0_13, %c0_14, %c0_15], %22 {strides = array<i32>} : memref<1x8x128xf32, #tpu.memory_space<vmem>>, vector<1x8x128xf32>,
    } else {
    }
    return
  }
  func.func @transform_0(%arg0: i32, %arg1: i32) -> (i32, i32) {
    %c1_i32 = arith.constant 1 : i32
    %0 = arith.muli %arg0, %c1_i32 : i32
    %1 = arith.addi %0, %arg1 : i32
    %c0_i32 = arith.constant 0 : i32
    %2 = arith.minsi %1, %c0_i32 : i32
    %c0_i32_0 = arith.constant 0 : i32
    %c0_i32_1 = arith.constant 0 : i32
    return %2, %c0_i32_0 : i32, i32
  }
  func.func @transform_1(%arg0: i32, %arg1: i32) -> (i32, i32) {
    %c1_i32 = arith.constant 1 : i32
    %0 = arith.muli %arg0, %c1_i32 : i32
    %1 = arith.addi %0, %arg1 : i32
    %c0_i32 = arith.constant 0 : i32
    %2 = arith.minsi %1, %c0_i32 : i32
    %c0_i32_0 = arith.constant 0 : i32
    %c0_i32_1 = arith.constant 0 : i32
    return %2, %c0_i32_0 : i32, i32
  }
  func.func @transform_2(%arg0: i32, %arg1: i32) -> (i32, i32, i32) {
    %c0_i32 = arith.constant 0 : i32
    %c0_i32_0 = arith.constant 0 : i32
    %c0_i32_1 = arith.constant 0 : i32
    return %arg0, %c0_i32, %c0_i32_0 : i32, i32, i32
  }
}

</mosaic_0001>

<llo_original>
// kernel: tpu_custom_call.1
$region0: #{tpu_custom_call.1}
  #allocation0 [shape = 'u32[]', space=smem, size = 0x4, offset = 0x4, fixed_abs, tag = 'smem constant byte address 0x4 - core index']
  #allocation1 [shape = 'u32[72,128]{1,0:T(1,128)}', space=vmem, size = 0x9000, scoped, tag = 'internal scratch']
  #allocation2 [shape = 'f32[2,8,128]{2,1,0:T(8,128)}', space=vmem, size = 0x2000, scoped, tag = 'scratch operand']
  %s0 = inlined_call_operand.hbm [shape: f32[16,128], index: 0, kind: input, shape index: {}]
  %s1 = inlined_call_operand.hbm [shape: f32[16,128], index: 1, kind: input, shape index: {}]
  %s2 = inlined_call_operand.hbm [shape: f32[2,8,128], index: 2, kind: output, shape index: {}]
  %s3 = sld [smem:[#allocation0]]
  $region65: #{tpu_custom_call.1} parent=0
    _
  %s5 = ssub.s32 1, %s3
  %s6 = scalar_select 0, %s5, %s3
  $region1: #{tpu_custom_call.1} parent=0
    #allocation3 [shape = 'u8[16384]{0}', space=vmem, size = 0x4000, scoped, tag = 'input window, operand 0']
    #allocation4 [shape = 's32[2]{0}', space=sflag, size = 0x8, scoped, tag = 'scoped memory for tpu_custom_call.1']
    #allocation5 [shape = 's32[2]{0}', space=sflag, size = 0x8, scoped, tag = 'scoped memory for tpu_custom_call.1']
    #allocation6 [shape = 'u8[16384]{0}', space=vmem, size = 0x4000, scoped, tag = 'input window, operand 1']
    #allocation7 [shape = 's32[2]{0}', space=sflag, size = 0x8, scoped, tag = 'scoped memory for tpu_custom_call.1']
    #allocation8 [shape = 'u8[8192]{0}', space=vmem, size = 0x2000, scoped, tag = 'output window, operand 0']
    %7 = vsyncpa [#allocation4], 0
    %s8 = scalar_lea.sflag [#allocation4], 1
    %9 = vsyncpa %s8, 0
    %10 = vsyncpa [#allocation7], 0
    %s11 = scalar_lea.sflag [#allocation7], 1
    %12 = vsyncpa %s11, 0
    %13 = vsyncpa [#allocation5], 0
    %s14 = scalar_lea.sflag [#allocation5], 1
    %15 = vsyncpa %s14, 0
    loop: start=0, step=1, limit=4
    $region2: #{tpu_custom_call.1} parent=1 // loop_pre_header
      _
    $region3: #{tpu_custom_call.1} parent=1 // loop_header
      %s17 = sphi 0, %s21
      %p18 = scmp.ge.s32.totalorder %s17, 4
      %s24 = sphi 0, %s36
      %s25 = sphi 0, %s32
      %s26 = sphi 0, %s24
      %s27 = sphi 0, %s25
      %s28 = sphi 0, %s26
      %s29 = sphi 0, %s27
      %s45 = sphi 0, %s47
      %s48 = sphi 0, %s45
      %s49 = sphi 0, %s48
      %s65 = sphi 0, %s49
      %s77 = sphi 0, %s79
      %s80 = sphi 0, %s77
      %s81 = sphi 0, %s80
      %s97 = sphi 0, %s81
      %s103 = sphi 0, %s105
      %s106 = sphi 0, %s103
      %s107 = sphi 0, %s106
      %s123 = sphi 0, %s107
    $region4: #{tpu_custom_call.1} parent=1 // loop_header_branch
      %20 = sbr.rel (%p18) target = $region8
    $region5: #{tpu_custom_call.1} parent=1 // loop_body
      %s22 = ssub.s32 %s17, 1
      %s23 = ssub.s32 %s17, 2
      %s30 = sadd.s32 1, %s25
      %p31 = scmp.ge.s32.totalorder %s30, 1
      %s32 = scalar_select %p31, 0, %s30
      %s33 = sadd.s32 1, %s24
      %s34 = scalar_select %p31, %s33, %s24
      %p35 = scmp.ge.s32.totalorder %s34, 2
      %s36 = scalar_select %p35, 0, %s34
      %s37 = sadd.s32 %s24, %s25
      %p38 = scmp.lt.s32.totalorder %s37, 0
      %s39 = scalar_select %p38, %s37, 0
      %s40 = sadd.s32 %s36, %s32
      %p41 = scmp.lt.s32.totalorder %s40, 0
      %s42 = scalar_select %p41, %s40, 0
      %s43 = ssub.s32 %s39, %s42
      %p44 = scmp.eq.s32.totalorder %s43, 0
      %s46 = sadd.s32 %s45, 1
      %s47 = scalar_select %p44, %s45, %s46
      %p50 = pneg %p44
      %p51 = scmp.eq.s32.totalorder %s17, 1
      %p52 = por %p50, %p51
      %p53 = scmp.ne.s32.totalorder %s45, %s48
      %p54 = scmp.eq.s32.totalorder %s17, 0
      %p55 = por %p53, %p54
      %p56 = scmp.ne.s32.totalorder %s45, %s48
      %p57 = scmp.eq.s32.totalorder %s22, 1
      %p58 = por %p56, %p57
      %p59 = scmp.ne.s32.totalorder %s48, %s49
      %p60 = scmp.eq.s32.totalorder %s22, 0
      %p61 = por %p59, %p60
      %p62 = scmp.ne.s32.totalorder %s48, %s49
      %p63 = scmp.eq.s32.totalorder %s23, 1
      %p64 = por %p62, %p63
      %p66 = scmp.ne.s32.totalorder %s49, %s65
      %p67 = scmp.eq.s32.totalorder %s23, 0
      %p68 = por %p66, %p67
      %s69 = sadd.s32 %s24, %s25
      %p70 = scmp.lt.s32.totalorder %s69, 0
      %s71 = scalar_select %p70, %s69, 0
      %s72 = sadd.s32 %s36, %s32
      %p73 = scmp.lt.s32.totalorder %s72, 0
      %s74 = scalar_select %p73, %s72, 0
      %s75 = ssub.s32 %s71, %s74
      %p76 = scmp.eq.s32.totalorder %s75, 0
      %s78 = sadd.s32 %s77, 1
      %s79 = scalar_select %p76, %s77, %s78
      %p82 = pneg %p76
      %p83 = scmp.eq.s32.totalorder %s17, 1
      %p84 = por %p82, %p83
      %p85 = scmp.ne.s32.totalorder %s77, %s80
      %p86 = scmp.eq.s32.totalorder %s17, 0
      %p87 = por %p85, %p86
      %p88 = scmp.ne.s32.totalorder %s77, %s80
      %p89 = scmp.eq.s32.totalorder %s22, 1
      %p90 = por %p88, %p89
      %p91 = scmp.ne.s32.totalorder %s80, %s81
      %p92 = scmp.eq.s32.totalorder %s22, 0
      %p93 = por %p91, %p92
      %p94 = scmp.ne.s32.totalorder %s80, %s81
      %p95 = scmp.eq.s32.totalorder %s23, 1
      %p96 = por %p94, %p95
      %p98 = scmp.ne.s32.totalorder %s81, %s97
      %p99 = scmp.eq.s32.totalorder %s23, 0
      %p100 = por %p98, %p99
      %s101 = ssub.s32 %s24, %s36
      %p102 = scmp.eq.s32.totalorder %s101, 0
      %s104 = sadd.s32 %s103, 1
      %s105 = scalar_select %p102, %s103, %s104
      %p108 = pneg %p102
      %p109 = scmp.eq.s32.totalorder %s17, 1
      %p110 = por %p108, %p109
      %p111 = scmp.ne.s32.totalorder %s103, %s106
      %p112 = scmp.eq.s32.totalorder %s17, 0
      %p113 = por %p111, %p112
      %p114 = scmp.ne.s32.totalorder %s103, %s106
      %p115 = scmp.eq.s32.totalorder %s22, 1
      %p116 = por %p114, %p115
      %p117 = scmp.ne.s32.totalorder %s106, %s107
      %p118 = scmp.eq.s32.totalorder %s22, 0
      %p119 = por %p117, %p118
      %p120 = scmp.ne.s32.totalorder %s106, %s107
      %p121 = scmp.eq.s32.totalorder %s23, 1
      %p122 = por %p120, %p121
      %p124 = scmp.ne.s32.totalorder %s107, %s123
      %p125 = scmp.eq.s32.totalorder %s23, 0
      %p126 = por %p124, %p125
      %p127 = scmp.le.s32.totalorder 1, %s17
      %p128 = scmp.lt.s32.totalorder %s17, 3
      %p129 = pnand %p127, %p128
      %p130 = pneg %p129
      // Predicated region
      $region9: #{tpu_custom_call.1} parent=5 // pred_check
        _
      $region10: #{tpu_custom_call.1} parent=5 // pred_check_branch
        %132 = sbr.rel (%p129) target = $region12
      $region11: #{tpu_custom_call.1} parent=5 // pred_region
        %s133 = ssub.s32 %s17, 1
      $region12: #{tpu_custom_call.1} parent=5 // pred_fallthru
        _
      %p134 = scmp.lt.s32.totalorder %s17, 2
      // Predicated region
      $region13: #{tpu_custom_call.1} parent=5 // pred_check
        %p135 = pneg %p134
      $region14: #{tpu_custom_call.1} parent=5 // pred_check_branch
        %137 = sbr.rel (%p135) target = $region16
      $region15: #{tpu_custom_call.1} parent=5 // pred_region
        // Predicated region
        $region17: #{tpu_custom_call.1} parent=15 // pred_check
          %p138 = pneg %p55
        $region18: #{tpu_custom_call.1} parent=15 // pred_check_branch
          %140 = sbr.rel (%p138) target = $region20
        $region19: #{tpu_custom_call.1} parent=15 // pred_region
          %s141 = sand.u32 %s45, 1
          %s142 = scalar_lea.sflag [#allocation4], %s141
          %s143 = sand.u32 %s45, 1
          %s144 = smul.addr %s143, 16
          %s145 = scalar_lea.vmem [#allocation3], %s144
          %s146 = sadd.s32 %s24, %s25
          %p147 = scmp.lt.s32.totalorder %s146, 0
          %s148 = scalar_select %p147, %s146, 0
          %s149 = smul.u32 2, %s148
          %151 = vsyncadd %s142, 0
          %s152 = smul.addr %s149, 8
          %s153 = scalar_lea.hbm %s0, %s152
          %s154 = sshll.u32 %s153, 4
          %s155 = int_to_ptr.hbm [resolvable:$true] %s154
          %s156 = sshll.u32 %s145, 4
          %s157 = int_to_ptr.vmem [resolvable:$true] %s156
          %162 = dma.hbm_to_vmem [thread:$0]  %s155, 256, %s157, %s142, 128, 128, 8
        $region20: #{tpu_custom_call.1} parent=15 // pred_fallthru
          _
        // Predicated region
        $region21: #{tpu_custom_call.1} parent=15 // pred_check
          %p163 = pneg %p87
        $region22: #{tpu_custom_call.1} parent=15 // pred_check_branch
          %165 = sbr.rel (%p163) target = $region24
        $region23: #{tpu_custom_call.1} parent=15 // pred_region
          %s166 = sand.u32 %s77, 1
          %s167 = scalar_lea.sflag [#allocation7], %s166
          %s168 = sand.u32 %s77, 1
          %s169 = smul.addr %s168, 16
          %s170 = scalar_lea.vmem [#allocation6], %s169
          %s171 = sadd.s32 %s24, %s25
          %p172 = scmp.lt.s32.totalorder %s171, 0
          %s173 = scalar_select %p172, %s171, 0
          %s174 = smul.u32 2, %s173
          %176 = vsyncadd %s167, 0
          %s177 = smul.addr %s174, 8
          %s178 = scalar_lea.hbm %s1, %s177
          %s179 = sshll.u32 %s178, 4
          %s180 = int_to_ptr.hbm [resolvable:$true] %s179
          %s181 = sshll.u32 %s170, 4
          %s182 = int_to_ptr.vmem [resolvable:$true] %s181
          %187 = dma.hbm_to_vmem [thread:$0]  %s180, 256, %s182, %s167, 128, 128, 8
        $region24: #{tpu_custom_call.1} parent=15 // pred_fallthru
          _
      $region16: #{tpu_custom_call.1} parent=5 // pred_fallthru
        _
      %p188 = scmp.le.s32.totalorder 1, %s17
      %p189 = scmp.lt.s32.totalorder %s17, 3
      %p190 = pnand %p188, %p189
      %p191 = pneg %p190
      // Predicated region
      $region25: #{tpu_custom_call.1} parent=5 // pred_check
        _
      $region26: #{tpu_custom_call.1} parent=5 // pred_check_branch
        %193 = sbr.rel (%p190) target = $region28
      $region27: #{tpu_custom_call.1} parent=5 // pred_region
        %s194 = ssub.s32 %s17, 1
        %s195 = sand.u32 %s48, 1
        %s196 = scalar_lea.sflag [#allocation4], %s195
        %s197 = sand.u32 %s48, 1
        %s198 = smul.addr %s197, 16
        %s199 = scalar_lea.vmem [#allocation3], %s198
        // Predicated region
        $region29: #{tpu_custom_call.1} parent=27 // pred_check
          %p200 = pneg %p61
        $region30: #{tpu_custom_call.1} parent=27 // pred_check_branch
          %202 = sbr.rel (%p200) target = $region32
        $region31: #{tpu_custom_call.1} parent=27 // pred_region
          %204 = dma.done %s196, 256
        $region32: #{tpu_custom_call.1} parent=27 // pred_fallthru
          _
        %s205 = sand.u32 %s80, 1
        %s206 = scalar_lea.sflag [#allocation7], %s205
        %s207 = sand.u32 %s80, 1
        %s208 = smul.addr %s207, 16
        %s209 = scalar_lea.vmem [#allocation6], %s208
        // Predicated region
        $region33: #{tpu_custom_call.1} parent=27 // pred_check
          %p210 = pneg %p93
        $region34: #{tpu_custom_call.1} parent=27 // pred_check_branch
          %212 = sbr.rel (%p210) target = $region36
        $region35: #{tpu_custom_call.1} parent=27 // pred_region
          %214 = dma.done %s206, 256
        $region36: #{tpu_custom_call.1} parent=27 // pred_fallthru
          _
        %s215 = sand.u32 %s48, 1
        %s216 = scalar_lea.sflag [#allocation4], %s215
        %s217 = sand.u32 %s48, 1
        %s218 = smul.addr %s217, 16
        %s219 = scalar_lea.vmem [#allocation3], %s218
        %p220 = pneg %p61
        %p221 = pneg %p58
        %s222 = sand.u32 %s80, 1
        %s223 = scalar_lea.sflag [#allocation7], %s222
        %s224 = sand.u32 %s80, 1
        %s225 = smul.addr %s224, 16
        %s226 = scalar_lea.vmem [#allocation6], %s225
        %p227 = pneg %p93
        %p228 = pneg %p90
        %p229 = pneg %p119
        %p230 = pneg %p116
        %s231 = sand.u32 %s106, 1
        %s232 = scalar_lea.sflag [#allocation5], %s231
        %s233 = sand.u32 %s106, 1
        %s234 = smul.addr %s233, 8
        %s235 = scalar_lea.vmem [#allocation8], %s234
        %s236 = sadd.s32 %s26, %s27
        %p237 = scmp.lt.s32.totalorder %s236, 0
        %s238 = scalar_select %p237, %s236, 0
        %s239 = smul.u32 2, %s238
        %s240 = sadd.s32 %s26, %s27
        %p241 = scmp.lt.s32.totalorder %s240, 0
        %s242 = scalar_select %p241, %s240, 0
        %s243 = smul.u32 2, %s242
        %p244 = scmp.eq.s32.totalorder %s27, 0
        // Predicated region
        $region37: #{tpu_custom_call.1} parent=27 // pred_check
          %p245 = pneg %p244
        $region38: #{tpu_custom_call.1} parent=27 // pred_check_branch
          %247 = sbr.rel (%p245) target = $region40
        $region39: #{tpu_custom_call.1} parent=27 // pred_region
          %248 = vst [vmem:[#allocation2] sm:$0xff] 0.0
          %249 = vst [vmem:[#allocation2 + $0x8] sm:$0xff] 0.0
        $region40: #{tpu_custom_call.1} parent=27 // pred_fallthru
          _
        %v250 = vld [vmem:[%s199] sm:$0xff]
        %v251 = vld [vmem:[%s199 + $0x8] sm:$0xff]
        %v252 = vld [vmem:[%s209] sm:$0xff]
        %v253 = vld [vmem:[%s209 + $0x8] sm:$0xff]
        %v254 = vlog2.pop %v250
        %v255 = vmul.f32 %v254, 0.6931472
        %v256 = vlog2.pop %v251
        %v257 = vmul.f32 %v256, 0.6931472
        %v258 = vmul.f32 %v255, %v252
        %v259 = vmul.f32 %v257, %v253
        %s260 = sadd.s32 %s26, %s27
        %s261 = smul.u32 %s260, 16
        %s262 = sadd.s32 %s261, 16
        %p263 = scmp.le.s32.totalorder %s262, 16
        // Predicated region
        $region41: #{tpu_custom_call.1} parent=27 // pred_check
          %p264 = pneg %p263
        $region42: #{tpu_custom_call.1} parent=27 // pred_check_branch
          %266 = sbr.rel (%p264) target = $region44
        $region43: #{tpu_custom_call.1} parent=27 // pred_region
          %v267 = vld [vmem:[#allocation2] sm:$0xff]
          %v268 = vld [vmem:[#allocation2 + $0x8] sm:$0xff]
          %v269 = vadd.f32 %v258, 0.0
          %v270 = vadd.f32 %v259, 0.0
          %v271 = vadd.f32 %v267, %v269
          %v272 = vadd.f32 %v268, %v270
          %273 = vst [vmem:[#allocation2] sm:$0xff] %v271
          %274 = vst [vmem:[#allocation2 + $0x8] sm:$0xff] %v272
        $region44: #{tpu_custom_call.1} parent=27 // pred_fallthru
          _
        %p275 = scmp.gt.s32.totalorder %s262, 16
        // Predicated region
        $region45: #{tpu_custom_call.1} parent=27 // pred_check
          %p276 = pneg %p275
        $region46: #{tpu_custom_call.1} parent=27 // pred_check_branch
          %278 = sbr.rel (%p276) target = $region48
        $region47: #{tpu_custom_call.1} parent=27 // pred_region
          %v279 = vlaneseq
          %v280 = vshrl.u32 %v279, 7
          %v281 = vadd.s32 %v280, 8
          %v282 = vstv %s261
          %v283 = vadd.s32 %v282, %v280
          %v284 = vadd.s32 %v282, %v281
          %vm285 = vcmp.lt.s32.totalorder %v283, 16
          %vm286 = vcmp.lt.s32.totalorder %v284, 16
          %v287 = vsel %vm285, %v258, 0.0
          %v288 = vsel %vm286, %v259, 0.0
          %v289 = vld [vmem:[#allocation2] sm:$0xff]
          %v290 = vld [vmem:[#allocation2 + $0x8] sm:$0xff]
          %v291 = vadd.f32 %v287, 0.0
          %v292 = vadd.f32 %v288, 0.0
          %v293 = vadd.f32 %v289, %v291
          %v294 = vadd.f32 %v290, %v292
          %295 = vst [vmem:[#allocation2] sm:$0xff] %v293
          %296 = vst [vmem:[#allocation2 + $0x8] sm:$0xff] %v294
        $region48: #{tpu_custom_call.1} parent=27 // pred_fallthru
          _
        // Predicated region
        $region49: #{tpu_custom_call.1} parent=27 // pred_check
          %p297 = pneg %p244
        $region50: #{tpu_custom_call.1} parent=27 // pred_check_branch
          %299 = sbr.rel (%p297) target = $region52
        $region51: #{tpu_custom_call.1} parent=27 // pred_region
          %v300 = vld [vmem:[#allocation2] sm:$0xff]
          %v301 = vld [vmem:[#allocation2 + $0x8] sm:$0xff]
          %v302 = vadd.f32 %v300, %v301
          %303 = vst [vmem:[%s235] sm:$0xff] %v302
        $region52: #{tpu_custom_call.1} parent=27 // pred_fallthru
          _
        %s304 = sand.u32 %s106, 1
        %s305 = scalar_lea.sflag [#allocation5], %s304
        %s306 = sand.u32 %s106, 1
        %s307 = smul.addr %s306, 8
        %s308 = scalar_lea.vmem [#allocation8], %s307
        // Predicated region
        $region53: #{tpu_custom_call.1} parent=27 // pred_check
          %p309 = pneg %p116
        $region54: #{tpu_custom_call.1} parent=27 // pred_check_branch
          %311 = sbr.rel (%p309) target = $region56
        $region55: #{tpu_custom_call.1} parent=27 // pred_region
          %313 = vsyncadd %s305, 0
          %s314 = smul.addr %s26, 8
          %s315 = scalar_lea.hbm %s2, %s314
          %s317 = sshll.u32 %s308, 4
          %s318 = int_to_ptr.vmem [resolvable:$true] %s317
          %s319 = sshll.u32 %s315, 4
          %s320 = int_to_ptr.hbm [resolvable:$true] %s319
          %322 = dma.vmem_to_hbm [thread:$0]  %s318, 128, %s320, %s305
        $region56: #{tpu_custom_call.1} parent=27 // pred_fallthru
          _
      $region28: #{tpu_custom_call.1} parent=5 // pred_fallthru
        _
      %p323 = scmp.le.s32.totalorder 2, %s17
      // Predicated region
      $region57: #{tpu_custom_call.1} parent=5 // pred_check
        %p324 = pneg %p323
      $region58: #{tpu_custom_call.1} parent=5 // pred_check_branch
        %326 = sbr.rel (%p324) target = $region60
      $region59: #{tpu_custom_call.1} parent=5 // pred_region
        %s327 = ssub.s32 %s17, 2
        // Predicated region
        $region61: #{tpu_custom_call.1} parent=59 // pred_check
          %p328 = pneg %p122
        $region62: #{tpu_custom_call.1} parent=59 // pred_check_branch
          %330 = sbr.rel (%p328) target = $region64
        $region63: #{tpu_custom_call.1} parent=59 // pred_region
          %s331 = sand.u32 %s107, 1
          %s332 = scalar_lea.sflag [#allocation5], %s331
          %s333 = sand.u32 %s107, 1
          %s334 = smul.addr %s333, 8
          %s335 = scalar_lea.vmem [#allocation8], %s334
          %337 = dma.done %s332, 128
        $region64: #{tpu_custom_call.1} parent=59 // pred_fallthru
          _
      $region60: #{tpu_custom_call.1} parent=5 // pred_fallthru
        _
    $region6: #{tpu_custom_call.1} parent=1 // loop_footer
      %s21 = sadd.s32 1, %s17
    $region7: #{tpu_custom_call.1} parent=1 // loop_footer_branch
      %16 = sbr.rel target = $region3
    $region8: #{tpu_custom_call.1} parent=1 // loop_exit
      _
    %338 = vsyncpa [#allocation4], 1
    %s339 = scalar_lea.sflag [#allocation4], 1
    %340 = vsyncpa %s339, 1
    %341 = vsyncpa [#allocation7], 1
    %s342 = scalar_lea.sflag [#allocation7], 1
    %343 = vsyncpa %s342, 1
    %344 = vsyncpa [#allocation5], 1
    %s345 = scalar_lea.sflag [#allocation5], 1
    %346 = vsyncpa %s345, 1

</llo_original>
